<compile_context>
chip_gen: v5e
topology: v5e:2x2
jax: 0.10.0
libtpu: 0.0.40
codegen_flags: <defaults>
</compile_context>

<pallas_src>
import functools

import jax
import jax.numpy as jnp
from jax.experimental import pallas as pl
from jax.experimental.pallas import tpu as pltpu


def _pad_channels_kernel(x_ref, o_ref, *, pad_width):
    """x_ref: (nb, C*S), o_ref: (nb, (C + 2*pad_c)*S), lane-dense flattened.

    Single full-tile store: concat(zeros, data, zeros) along the lane axis.
    """
    data = x_ref[...].astype(o_ref.dtype)
    if pad_width == 0:
        o_ref[...] = data
    else:
        zeros = jnp.zeros((data.shape[0], pad_width), o_ref.dtype)
        o_ref[...] = jnp.concatenate([zeros, data, zeros], axis=-1)


def _min_grid_steps():
    """>= 2 steps per TensorCore: dual-TC parts want a grid of >= 4."""
    try:
        kind = jax.devices()[0].device_kind.lower()
    except Exception:
        return 2
    if any(tag in kind for tag in ("v7", "v4", "v5p")):
        return 4
    return 2


def _pick_block_n(n, per_image_bytes, *, budget_bytes, min_steps, sublane):
    """Batch-block size: biggest block under budget_bytes (in+out, before
    double-buffering), a multiple of the dtype sublane tile (or == n), and
    leaving >= min_steps grid steps when the batch allows it."""
    cap = max(1, budget_bytes // max(per_image_bytes, 1))
    if min_steps > 1:
        cap = min(cap, max(1, n // min_steps))
    if cap >= n:
        return n
    block_n = (cap // sublane) * sublane
    if block_n < sublane:
        block_n = sublane          # tiny cap: keep sublane-aligned anyway
    return min(block_n, n)


def padded_identity(x_nchw, pad_c):
    """Pallas implementation of PaddedIdentity with the option-A padfunc.

    x_nchw: (N, C, H, W) -> (N, C + 2*pad_c, ceil(H/2), ceil(W/2))
    """
    N, C, H, W = x_nchw.shape
    Ho, Wo = -(-H // 2), -(-W // 2)          # ceil, matches x[:, :, ::2, ::2]
    C_out = C + 2 * pad_c
    S = Ho * Wo
    CS_in = C * S
    CS_out = C_out * S

    # Spatial ::2 subsample, then flatten (C, Ho, Wo) into one lane-dense axis.
    # allow_input_fusion lets XLA fuse this producer into the kernel input.
    xs = x_nchw[:, :, ::2, ::2].reshape(N, CS_in)

    # Per-image VMEM estimate (in + out rows, lane-padded to 128).
    itemsize = jnp.dtype(x_nchw.dtype).itemsize
    sublane = max(8, 32 // itemsize)                  # 8 f32 / 16 bf16 / 32 i8
    lane_in = -(-CS_in // 128) * 128
    lane_out = -(-CS_out // 128) * 128
    per_image = (lane_in + lane_out) * itemsize

    block_n = _pick_block_n(
        N, per_image,
        budget_bytes=8 * 1024 * 1024,
        min_steps=_min_grid_steps(),
        sublane=sublane,
    )
    grid_n = pl.cdiv(N, block_n)          # partial last block handled by Pallas

    kernel = functools.partial(_pad_channels_kernel, pad_width=pad_c * S)
    out_flat = pl.pallas_call(
        kernel,
        out_shape=jax.ShapeDtypeStruct((N, CS_out), x_nchw.dtype),
        grid=(grid_n,),
        in_specs=[pl.BlockSpec((block_n, CS_in), lambda i: (i, 0))],
        out_specs=pl.BlockSpec((block_n, CS_out), lambda i: (i, 0)),
        compiler_params=pltpu.CompilerParams(
            dimension_semantics=("parallel",),
            vmem_limit_bytes=32 * 1024 * 1024,
            allow_input_fusion=[True],
        ),
    )(xs)

    # Free, contiguous reshape back to NCHW.
    return out_flat.reshape(N, C_out, Ho, Wo)


# jit so the slice, reshapes and pallas_call compile into one program.
padded_identity_jit = jax.jit(padded_identity, static_argnums=(1,))


def padded_identity_ref(x_nchw, pad_c):
    """Plain-JAX reference for F.pad(x[:, :, ::2, ::2], (0,0,0,0,p,p))."""
    y = x_nchw[:, :, ::2, ::2]
    return jnp.pad(y, ((0, 0), (pad_c, pad_c), (0, 0), (0, 0)))


if __name__ == "__main__":
    key = jax.random.PRNGKey(0)
    # batch=2, channels=4, spatial=16x16; planes = 2*C = 8 -> pad = planes//4 = 2.
    N, C, H, W = 2, 4, 16, 16
    pad_c = 2
    x = jax.random.normal(key, (N, C, H, W), dtype=jnp.float32)

    out = padded_identity_jit(x, pad_c)
    out = jax.block_until_ready(out)

    expected = padded_identity_ref(x, pad_c)
    assert out.shape == (N, C + 2 * pad_c, (H + 1) // 2, (W + 1) // 2), out.shape
    assert jnp.allclose(out, expected), "mismatch vs. reference"

    print("KERNEL_OK")
</pallas_src>

<mosaic_0001>
module attributes {stable_mosaic.version = 11 : i64} {
  func.func @_pad_channels_kernel(%arg0: i32, %arg1: memref<2x256xf32, #tpu.memory_space<vmem>>, %arg2: memref<2x512xf32, #tpu.memory_space<vmem>>) attributes {dimension_semantics = [#tpu.dimension_semantics<parallel>], iteration_bounds = array<i64: 1>, scalar_prefetch = 0 : i64, scratch_operands = 0 : i64, tpu.core_type = #tpu.core_type<tc>, window_params = [{transform_indices = @transform_0, window_bounds = array<i64: 2, 256>}, {transform_indices = @transform_1, window_bounds = array<i64: 2, 512>}]} {
    %c0 = arith.constant 0 : index
    %c0_0 = arith.constant 0 : index
    %0 = vector.load %arg1[%c0, %c0_0] : memref<2x256xf32, #tpu.memory_space<vmem>>, vector<2x256xf32>
    %cst = arith.constant 0.000000e+00 : f32
    %1 = vector.broadcast %cst : f32 to vector<2x128xf32>
    %2 = tpu.concatenate %1, %0, %1 in 1 : vector<2x128xf32>, vector<2x256xf32>, vector<2x128xf32> -> vector<2x512xf32>
    %c0_1 = arith.constant 0 : index
    %c0_2 = arith.constant 0 : index
    %3 = vector.load %arg2[%c0_1, %c0_2] : memref<2x512xf32, #tpu.memory_space<vmem>>, vector<2x512xf32>
    tpu.vector_store %arg2[%c0_1, %c0_2], %2 {strides = array<i32>} : memref<2x512xf32, #tpu.memory_space<vmem>>, vector<2x512xf32>,
    return
  }
  func.func @transform_0(%arg0: i32) -> (i32, i32) {
    %c0_i32 = arith.constant 0 : i32
    %c0_i32_0 = arith.constant 0 : i32
    return %arg0, %c0_i32 : i32, i32
  }
  func.func @transform_1(%arg0: i32) -> (i32, i32) {
    %c0_i32 = arith.constant 0 : i32
    %c0_i32_0 = arith.constant 0 : i32
    return %arg0, %c0_i32 : i32, i32
  }
}

</mosaic_0001>

<llo_original>
// kernel: padded_identity.1
$region0: #{padded_identity.1}
  #allocation0 [shape = 'u32[]', space=smem, size = 0x4, offset = 0x4, fixed_abs, tag = 'smem constant byte address 0x4 - core index']
  #allocation1 [shape = 'u32[72,128]{1,0:T(1,128)}', space=vmem, size = 0x9000, scoped, tag = 'internal scratch']
  %s0 = inlined_call_operand.vmem [shape: f32[2,256], index: 0, kind: input, shape index: {}]
  %s1 = inlined_call_operand.vmem [shape: f32[2,512], index: 1, kind: output, shape index: {}]
  %s2 = sld [smem:[#allocation0]]
  $region14: #{padded_identity.1} parent=0
    _
  %s4 = ssub.s32 1, %s2
  %s5 = scalar_select 0, %s4, %s2
  // Predicated region
  $region2: #{padded_identity.1} parent=0 // pred_check
    _
  $region3: #{padded_identity.1} parent=0 // pred_check_branch
    %7 = sbr.rel (0) target = $region5
  $region4: #{padded_identity.1} parent=0 // pred_region
    _
  $region5: #{padded_identity.1} parent=0 // pred_fallthru
    _
  %v8 = vld [vmem:[%s0] sm:$0xf]
  %10 = vst [vmem:[#allocation1] ss:$4 sm:$0xff] %v8
  %v11 = vld.sshfl [vmem:[#allocation1] sm:$0xff pattern:$0x73625140]
  %v12 = vld.sshfl [vmem:[#allocation1 + $0x8] sm:$0xff pattern:$0x73625140]
  %v14 = vrot.slane %v11, 6
  %v15 = vrot.slane %v12, 4
  %v16 = vrot.slane 0.0, 2
  %vm17 = vcmask 1041408
  %v18 = vsel %vm17, 0.0, %v14
  %vm19 = vcmask 1045508
  %v20 = vsel %vm19, %v15, %v16
  %vm21 = vcmask 1043456
  %v22 = vsel %vm21, %v18, %v20
  %24 = vst [vmem:[%s1] sm:$0xff] %v22
  // Predicated region
  $region6: #{padded_identity.1} parent=0 // pred_check
    _
  $region7: #{padded_identity.1} parent=0 // pred_check_branch
    %26 = sbr.rel (0) target = $region9
  $region8: #{padded_identity.1} parent=0 // pred_region
    _
  $region9: #{padded_identity.1} parent=0 // pred_fallthru
    _
  // Predicated region
  $region10: #{padded_identity.1} parent=0 // pred_check
    _
  $region11: #{padded_identity.1} parent=0 // pred_check_branch
    %28 = sbr.rel (0) target = $region13
  $region12: #{padded_identity.1} parent=0 // pred_region
    _
  $region13: #{padded_identity.1} parent=0 // pred_fallthru
    _

</llo_original>
